<compile_context>
chip_gen: v5e
topology: v5e:2x2
jax: 0.10.0
libtpu: 0.0.40
codegen_flags: <defaults>
</compile_context>

<pallas_src>
import functools
import math

import jax
import jax.numpy as jnp
from jax.experimental import pallas as pl
from jax.experimental.pallas import tpu as pltpu


_MIN_BLOCK_BYTES = 1 * 1024 * 1024      # below this, per-grid-step overhead dominates
_TARGET_BLOCK_BYTES = 2 * 1024 * 1024   # HBM-roofline DMA sweet spot
_FALLBACK_VMEM_CAP = 64 * 1024 * 1024   # assume the smallest (v7x) if query fails


def _round_up(x, m):
    return (x + m - 1) // m * m


def _cdiv(a, b):
    return -(-a // b)


@functools.lru_cache(maxsize=1)
def _vmem_budgets():
    """Generation-aware (scoped VMEM limit, pipeline block budget) in bytes."""
    cap = 0
    try:
        info = pltpu.get_tpu_info()
        cap = int(getattr(info, "vmem_capacity_bytes", 0) or 0)
    except Exception:
        cap = 0
    if cap <= 0:
        cap = _FALLBACK_VMEM_CAP
    # 128 MiB physical (v5e/v6e) -> 96 MiB scoped; 64 MiB (v7x) -> 48 MiB.
    vmem_limit = max(min(cap * 3 // 4, cap - 8 * 1024 * 1024), 16 * 1024 * 1024)
    # Headroom inside the scoped limit for weights / scratch / compiler temps.
    block_budget = max(vmem_limit - 8 * 1024 * 1024, 8 * 1024 * 1024)
    return vmem_limit, block_budget


def _sublane_pad(C, dtype_bytes):
    # Sub-32-bit dtypes pack along sublanes: bf16 pads C to 16, int8/fp8 to 32.
    return _round_up(C, max(8, 32 // max(1, dtype_bytes)))


def _fused_image_vmem_bytes(C, HW, dtype_bytes):
    """Per-image VMEM footprint of one fused grid step (per tb=1)."""
    c_pad = _sublane_pad(C, dtype_bytes)
    hw_pad = _round_up(HW, 128)
    per_elem = 4 * dtype_bytes               # double-buffered input + output blocks
    if dtype_bytes < 4:
        per_elem += 4                        # f32 cast temp inside the squeeze sum
    return c_pad * hw_pad * per_elem


def _pick_batch_tile(batch, image_hbm_bytes, image_vmem_bytes, budget_bytes):
    """Images per fused grid step (must divide `batch`, so no batch padding).

    Preference order:
      1. per-step block holds >= ~1 MiB of real data (DMA sweet spot), unless
         even the whole batch is smaller than that;
      2. an even number of grid steps >= 2 (balanced 2-TC sharding on v7x,
         plus pipeline overlap);
      3. any multi-step grid;
      4. block bytes closest to the ~2 MiB target.
    """
    max_tb = max(1, min(batch, budget_bytes // max(1, image_vmem_bytes)))
    divisors = [d for d in range(1, batch + 1) if batch % d == 0 and d <= max_tb]
    largest = max(divisors)

    def rank(d):
        steps = batch // d
        blk = d * image_hbm_bytes
        big_enough = (blk >= _MIN_BLOCK_BYTES) or (d == largest)
        even_multi = (steps >= 2) and (steps % 2 == 0)
        multi = steps >= 2
        dist = abs(math.log2(max(blk, 1)) - math.log2(_TARGET_BLOCK_BYTES))
        return (big_enough, even_multi, multi, -dist)

    return max(divisors, key=rank)


def _pick_hw_tile(C, HW, dtype_bytes, budget_bytes, tb=1):
    """Spatial chunk (multiple of 128 lanes) for the streamed path."""
    c_pad = _sublane_pad(C, dtype_bytes)
    # Phase 1 step: 2 input buffers + f32 chunk temp.  Phase 2: 2 in + 2 out.
    per_lane = tb * c_pad * max(2 * dtype_bytes + 4, 4 * dtype_bytes)
    thw_budget = max(128, budget_bytes // max(1, per_lane) // 128 * 128)
    hwp = _round_up(HW, 128)
    nhw = _cdiv(hwp, thw_budget)
    # Balance the chunk sizes across the grid (no array padding is ever added;
    # the last partial block's DMA is clamped to HW, so there is no HBM waste).
    thw = min(_round_up(_cdiv(hwp, nhw), 128), hwp)
    nhw = _cdiv(HW, thw)
    return thw, nhw


# -----------------------------------------------------------------------------
# Fused single-pass kernel: whole (TB, C, HW) slab resident in VMEM.
# -----------------------------------------------------------------------------
def _make_fused_kernel(inv_hw):
    def kernel(x_ref, w1_ref, w2_ref, o_ref):
        xs = x_ref[...]                                    # (TB, C, HW), native dtype

        # Squeeze: f32 accumulation over the full-extent spatial axis.  The
        # block equals the logical HW, so Mosaic masks the reduction for
        # ragged H*W — no wrapper-side zero padding is needed.  For sub-f32
        # inputs the cast makes an f32 chunk temp; that temp is included in
        # the VMEM budget math in the wrapper.
        y = jnp.sum(xs.astype(jnp.float32), axis=-1) * inv_hw          # (TB, C)

        # Excitation: two bias-free linears (MXU, f32 accumulation), ReLU,
        # sigmoid (VPU / EUP) — all on a tiny [TB, C] tensor.
        h = jnp.maximum(
            jnp.dot(y, w1_ref[...], preferred_element_type=jnp.float32), 0.0)
        s = jax.nn.sigmoid(
            jnp.dot(h, w2_ref[...], preferred_element_type=jnp.float32))

        # Scale: broadcast multiply in the input dtype (no f32 copy of the
        # slab for bf16 inputs; the f32 math above only touches [TB, C]).
        o_ref[...] = xs * s.astype(o_ref.dtype)[:, :, None]

    return kernel


# -----------------------------------------------------------------------------
# Two-phase streamed path (feature maps too large to hold in VMEM).
# -----------------------------------------------------------------------------
def _make_squeeze_excite_kernel(inv_hw, hw_total, thw):
    has_tail = (hw_total % thw) != 0

    def kernel(x_ref, w1_ref, w2_ref, s_ref, acc_ref):
        hw = pl.program_id(1)

        @pl.when(hw == 0)
        def _():
            acc_ref[...] = jnp.zeros_like(acc_ref)

        # Accumulate the per-channel spatial sum in f32 across HW chunks.
        xs = x_ref[...].astype(jnp.float32)                # (TB, C, THW)
        if has_tail:
            # The last chunk is a partial block (extends past HW); its padded
            # lanes hold unspecified data, so mask them before summing.
            col = jax.lax.broadcasted_iota(jnp.int32, xs.shape, 2)
            valid = (hw * thw + col) < hw_total
            xs = jnp.where(valid, xs, 0.0)
        acc_ref[...] += jnp.sum(xs, axis=-1)

        @pl.when(hw == pl.num_programs(1) - 1)
        def _():
            y = acc_ref[...] * inv_hw                                   # (TB, C)
            h = jnp.maximum(
                jnp.dot(y, w1_ref[...], preferred_element_type=jnp.float32), 0.0)
            s = jax.nn.sigmoid(
                jnp.dot(h, w2_ref[...], preferred_element_type=jnp.float32))
            s_ref[...] = s[None].astype(s_ref.dtype)                    # (1, TB, C)

    return kernel


def _scale_kernel(x_ref, s_ref, o_ref):
    # Partial tail chunks: garbage input lanes produce garbage outputs, but
    # Pallas drops out-of-bounds writes, so only the valid lanes reach HBM.
    s = s_ref[0]                                                        # (TB, C) f32
    o_ref[...] = x_ref[...] * s.astype(o_ref.dtype)[:, :, None]


# -----------------------------------------------------------------------------
# Wrapper
# -----------------------------------------------------------------------------
def se_block(x, w1, w2, *, block_budget_bytes=None):
    """SE block forward.

    x:  [B, C, H, W]   (NCHW, matching the PyTorch module)
    w1: [C, C_red]     (first Linear weight, transposed for y @ w1)
    w2: [C_red, C]     (second Linear weight, transposed)
    """
    B, C, H, W = x.shape
    HW = H * W
    C_red = w1.shape[1]
    dtype_bytes = x.dtype.itemsize
    inv_hw = 1.0 / float(HW)

    vmem_limit, default_budget = _vmem_budgets()
    if block_budget_bytes is None:
        block_budget_bytes = default_budget

    x_flat = x.reshape(B, C, HW)                    # free reshape (contiguous NCHW)
    image_vmem = _fused_image_vmem_bytes(C, HW, dtype_bytes)
    image_hbm = C * HW * dtype_bytes

    if image_vmem <= block_budget_bytes:
        # ------------------------ fused single-pass path ------------------------
        # Read x once, write once (purely HBM-bandwidth bound).  Full-extent
        # (C, HW) blocks: no padding, no output slicing, ragged H*W handled by
        # Mosaic's masked reduce/store inside the kernel.
        tb = _pick_batch_tile(B, image_hbm, image_vmem, block_budget_bytes)
        out = pl.pallas_call(
            _make_fused_kernel(inv_hw),
            out_shape=jax.ShapeDtypeStruct((B, C, HW), x.dtype),
            grid_spec=pltpu.PrefetchScalarGridSpec(
                num_scalar_prefetch=0,
                grid=(B // tb,),
                in_specs=[
                    pl.BlockSpec((tb, C, HW), lambda b: (b, 0, 0)),
                    # Weights: constant block index -> DMA'd once and kept
                    # resident by the pipeline (tiny).
                    pl.BlockSpec((C, C_red), lambda b: (0, 0)),
                    pl.BlockSpec((C_red, C), lambda b: (0, 0)),
                ],
                out_specs=pl.BlockSpec((tb, C, HW), lambda b: (b, 0, 0)),
            ),
            compiler_params=pltpu.CompilerParams(
                dimension_semantics=("parallel",),
                vmem_limit_bytes=vmem_limit,
            ),
        )(x_flat, w1, w2)
    else:
        # ------------------------ two-phase streamed path ------------------------
        tb = 1                       # bandwidth-bound; per-image streaming is enough
        thw, nhw = _pick_hw_tile(C, HW, dtype_bytes, block_budget_bytes, tb)
        nb = B // tb

        # Phase 1: stream HW chunks, accumulate per-channel sums in a VMEM
        # scratch, finalize the excitation MLP on the last chunk -> scales s.
        s = pl.pallas_call(
            _make_squeeze_excite_kernel(inv_hw, HW, thw),
            out_shape=jax.ShapeDtypeStruct((nb, tb, C), jnp.float32),
            grid_spec=pltpu.PrefetchScalarGridSpec(
                num_scalar_prefetch=0,
                grid=(nb, nhw),
                in_specs=[
                    pl.BlockSpec((tb, C, thw), lambda b, k: (b, 0, k)),
                    pl.BlockSpec((C, C_red), lambda b, k: (0, 0)),
                    pl.BlockSpec((C_red, C), lambda b, k: (0, 0)),
                ],
                out_specs=pl.BlockSpec((1, tb, C), lambda b, k: (b, 0, 0)),
                scratch_shapes=[pltpu.VMEM((tb, C), jnp.float32)],
            ),
            compiler_params=pltpu.CompilerParams(
                # NOTE: the HW axis must remain the LAST grid axis and be
                # "arbitrary" — the f32 accumulator scratch relies on it being
                # iterated sequentially per image.
                dimension_semantics=("parallel", "arbitrary"),
                vmem_limit_bytes=vmem_limit,
            ),
        )(x_flat, w1, w2)

        # Phase 2: re-stream HW chunks and apply the per-channel scale.
        out = pl.pallas_call(
            _scale_kernel,
            out_shape=jax.ShapeDtypeStruct((B, C, HW), x.dtype),
            grid_spec=pltpu.PrefetchScalarGridSpec(
                num_scalar_prefetch=0,
                grid=(nb, nhw),
                in_specs=[
                    pl.BlockSpec((tb, C, thw), lambda b, k: (b, 0, k)),
                    pl.BlockSpec((1, tb, C), lambda b, k: (b, 0, 0)),
                ],
                out_specs=pl.BlockSpec((tb, C, thw), lambda b, k: (b, 0, k)),
            ),
            compiler_params=pltpu.CompilerParams(
                dimension_semantics=("parallel", "parallel"),
                vmem_limit_bytes=vmem_limit,
            ),
        )(x_flat, s)

    return out.reshape(B, C, H, W)


def init_se_params(key, ch_in, reduction):
    """Deterministic init mimicking nn.Linear default (kaiming-uniform, no bias)."""
    c_red = ch_in // reduction
    k1, k2 = jax.random.split(key)
    bound1 = 1.0 / math.sqrt(ch_in)
    bound2 = 1.0 / math.sqrt(c_red)
    # nn.Linear weight is (out, in); we store the transpose for y @ W.
    w1 = jax.random.uniform(k1, (ch_in, c_red), jnp.float32, -bound1, bound1)
    w2 = jax.random.uniform(k2, (c_red, ch_in), jnp.float32, -bound2, bound2)
    return w1, w2


def se_block_ref(x, w1, w2):
    """Pure-JAX reference for correctness checking."""
    y = jnp.mean(x.astype(jnp.float32), axis=(2, 3))           # [B, C]
    h = jnp.maximum(y @ w1, 0.0)
    s = jax.nn.sigmoid(h @ w2)
    return (x.astype(jnp.float32) * s[:, :, None, None]).astype(x.dtype)


if __name__ == "__main__":
    key = jax.random.PRNGKey(0)
    kx1, kx2, kx3, kw = jax.random.split(key, 4)

    C, reduction = 32, 4
    w1, w2 = init_se_params(kw, C, reduction)

    # 1) Fused path, lane-dense spatial dim (HW = 256), no padding anywhere.
    x1 = jax.random.normal(kx1, (8, C, 16, 16), dtype=jnp.float32)
    out1 = jax.block_until_ready(se_block(x1, w1, w2))
    ref1 = se_block_ref(x1, w1, w2)
    assert out1.shape == x1.shape
    assert jnp.allclose(out1, ref1, atol=1e-5, rtol=1e-5)

    # 2) Fused path with ragged H*W (100): full-extent blocks, masked reduce,
    #    no jnp.pad / output slice round-trip.
    x2 = jax.random.normal(kx2, (4, C, 10, 10), dtype=jnp.float32)
    out2 = jax.block_until_ready(se_block(x2, w1, w2))
    ref2 = se_block_ref(x2, w1, w2)
    assert jnp.allclose(out2, ref2, atol=1e-5, rtol=1e-5)

    # 3) Two-phase streamed path (forced via a tiny block budget) — the
    #    structure used when the (C, HW) slab exceeds the VMEM budget.
    x3 = jax.random.normal(kx3, (2, C, 32, 32), dtype=jnp.float32)
    out3 = jax.block_until_ready(se_block(x3, w1, w2, block_budget_bytes=64 * 1024))
    ref3 = se_block_ref(x3, w1, w2)
    assert jnp.allclose(out3, ref3, atol=1e-5, rtol=1e-5)

    # 4) bf16 input: f32 pooled accumulation, bf16 scale multiply on the slab.
    x4 = x1.astype(jnp.bfloat16)
    out4 = jax.block_until_ready(se_block(x4, w1, w2))
    ref4 = se_block_ref(x4, w1, w2)
    assert out4.dtype == jnp.bfloat16
    assert jnp.allclose(out4.astype(jnp.float32), ref4.astype(jnp.float32),
                        atol=5e-2, rtol=5e-2)

    print("KERNEL_OK")
</pallas_src>

<mosaic_0001>
module attributes {stable_mosaic.version = 11 : i64} {
  func.func @kernel(%arg0: i32, %arg1: memref<8x32x256xf32, #tpu.memory_space<vmem>>, %arg2: memref<32x8xf32, #tpu.memory_space<vmem>>, %arg3: memref<8x32xf32, #tpu.memory_space<vmem>>, %arg4: memref<8x32x256xf32, #tpu.memory_space<vmem>>) attributes {dimension_semantics = [#tpu.dimension_semantics<parallel>], iteration_bounds = array<i64: 1>, scalar_prefetch = 0 : i64, scratch_operands = 0 : i64, tpu.core_type = #tpu.core_type<tc>, window_params = [{transform_indices = @transform_0, window_bounds = array<i64: 8, 32, 256>}, {pipeline_mode = #tpu.pipeline_mode<synchronous>, transform_indices = @transform_1, window_bounds = array<i64: 32, 8>}, {pipeline_mode = #tpu.pipeline_mode<synchronous>, transform_indices = @transform_2, window_bounds = array<i64: 8, 32>}, {transform_indices = @transform_3, window_bounds = array<i64: 8, 32, 256>}]} {
    %c0 = arith.constant 0 : index
    %c0_0 = arith.constant 0 : index
    %c0_1 = arith.constant 0 : index
    %0 = vector.load %arg1[%c0, %c0_0, %c0_1] : memref<8x32x256xf32, #tpu.memory_space<vmem>>, vector<8x32x256xf32>
    %cst = arith.constant dense<0.000000e+00> : vector<8x32xf32>
    %1 = vector.multi_reduction <add>, %0, %cst [2] : vector<8x32x256xf32> to vector<8x32xf32>
    %cst_2 = arith.constant 3.906250e-03 : f32
    %2 = vector.broadcast %cst_2 : f32 to vector<8x32xf32>
    %3 = arith.mulf %1, %2 : vector<8x32xf32>
    %c0_3 = arith.constant 0 : index
    %c0_4 = arith.constant 0 : index
    %4 = vector.load %arg2[%c0_3, %c0_4] : memref<32x8xf32, #tpu.memory_space<vmem>>, vector<32x8xf32>
    %cst_5 = arith.constant dense<0.000000e+00> : vector<8x8xf32>
    %5 = tpu.matmul %3, %4, %cst_5 {dimension_numbers = #tpu.dot_dimension_numbers<[1], [0], [0], [1], [0, 0, 1, 1], [], []>} : vector<8x32xf32>, vector<32x8xf32>, vector<8x8xf32> -> vector<8x8xf32>
    %cst_6 = arith.constant 0.000000e+00 : f32
    %6 = vector.broadcast %cst_6 : f32 to vector<8x8xf32>
    %7 = arith.maximumf %5, %6 : vector<8x8xf32>
    %c0_7 = arith.constant 0 : index
    %c0_8 = arith.constant 0 : index
    %8 = vector.load %arg3[%c0_7, %c0_8] : memref<8x32xf32, #tpu.memory_space<vmem>>, vector<8x32xf32>
    %cst_9 = arith.constant dense<0.000000e+00> : vector<8x32xf32>
    %9 = tpu.matmul %7, %8, %cst_9 {dimension_numbers = #tpu.dot_dimension_numbers<[1], [0], [0], [1], [0, 0, 1, 1], [], []>} : vector<8x8xf32>, vector<8x32xf32>, vector<8x32xf32> -> vector<8x32xf32>
    %10 = arith.negf %9 : vector<8x32xf32>
    %11 = math.exp %10 : vector<8x32xf32>
    %cst_10 = arith.constant 1.000000e+00 : f32
    %12 = vector.broadcast %cst_10 : f32 to vector<8x32xf32>
    %13 = arith.addf %12, %11 : vector<8x32xf32>
    %14 = arith.divf %12, %13 : vector<8x32xf32>
    %15 = vector.shape_cast %14 : vector<8x32xf32> to vector<8x32x1xf32>
    %16 = vector.broadcast %15 : vector<8x32x1xf32> to vector<8x32x256xf32>
    %17 = arith.mulf %0, %16 : vector<8x32x256xf32>
    %c0_11 = arith.constant 0 : index
    %c0_12 = arith.constant 0 : index
    %c0_13 = arith.constant 0 : index
    %18 = vector.load %arg4[%c0_11, %c0_12, %c0_13] : memref<8x32x256xf32, #tpu.memory_space<vmem>>, vector<8x32x256xf32>
    tpu.vector_store %arg4[%c0_11, %c0_12, %c0_13], %17 {strides = array<i32>} : memref<8x32x256xf32, #tpu.memory_space<vmem>>, vector<8x32x256xf32>,
    return
  }
  func.func @transform_0(%arg0: i32) -> (i32, i32, i32) {
    %c0_i32 = arith.constant 0 : i32
    %c0_i32_0 = arith.constant 0 : i32
    %c0_i32_1 = arith.constant 0 : i32
    return %arg0, %c0_i32, %c0_i32_0 : i32, i32, i32
  }
  func.func @transform_1(%arg0: i32) -> (i32, i32) {
    %c0_i32 = arith.constant 0 : i32
    %c0_i32_0 = arith.constant 0 : i32
    %c0_i32_1 = arith.constant 0 : i32
    return %c0_i32, %c0_i32_0 : i32, i32
  }
  func.func @transform_2(%arg0: i32) -> (i32, i32) {
    %c0_i32 = arith.constant 0 : i32
    %c0_i32_0 = arith.constant 0 : i32
    %c0_i32_1 = arith.constant 0 : i32
    return %c0_i32, %c0_i32_0 : i32, i32
  }
  func.func @transform_3(%arg0: i32) -> (i32, i32, i32) {
    %c0_i32 = arith.constant 0 : i32
    %c0_i32_0 = arith.constant 0 : i32
    %c0_i32_1 = arith.constant 0 : i32
    return %arg0, %c0_i32, %c0_i32_0 : i32, i32, i32
  }
}

</mosaic_0001>

<llo_original>
// kernel: tpu_custom_call.1
$region0: #{tpu_custom_call.1}
  #allocation0 [shape = 'u32[]', space=smem, size = 0x4, offset = 0x4, fixed_abs, tag = 'smem constant byte address 0x4 - core index']
  #allocation1 [shape = 'u32[72,128]{1,0:T(1,128)}', space=vmem, size = 0x9000, scoped, tag = 'internal scratch']
  %s0 = inlined_call_operand.hbm [shape: f32[8,32,256], index: 0, kind: input, shape index: {}]
  %s1 = inlined_call_operand.vmem [shape: f32[32,8], index: 1, kind: input, shape index: {}]
  %s2 = inlined_call_operand.vmem [shape: f32[8,32], index: 2, kind: input, shape index: {}]
  %s3 = inlined_call_operand.hbm [shape: f32[8,32,256], index: 3, kind: output, shape index: {}]
  %s4 = sld [smem:[#allocation0]]
  $region26: #{tpu_custom_call.1} parent=0
    _
  %s6 = ssub.s32 1, %s4
  %s7 = scalar_select 0, %s6, %s4
  $region1: #{tpu_custom_call.1} parent=0
    #allocation2 [shape = 'u8[262144]{0}', space=vmem, size = 0x40000, scoped, tag = 'input window, operand 0, single buffered']
    #allocation3 [shape = 's32[1]{0}', space=sflag, size = 0x4, scoped, tag = 'scoped memory for tpu_custom_call.1']
    #allocation4 [shape = 's32[1]{0}', space=sflag, size = 0x4, scoped, tag = 'scoped memory for tpu_custom_call.1']
    #allocation5 [shape = 'u8[262144]{0}', space=vmem, size = 0x40000, scoped, tag = 'output window, operand 0, single buffered']
    %8 = vsyncpa [#allocation3], 0
    %9 = vsyncpa [#allocation4], 0
    // Predicated region
    $region2: #{tpu_custom_call.1} parent=1 // pred_check
      _
    $region3: #{tpu_custom_call.1} parent=1 // pred_check_branch
      %11 = sbr.rel (0) target = $region5
    $region4: #{tpu_custom_call.1} parent=1 // pred_region
      %13 = vsyncadd [#allocation3], 0
      %s14 = sshll.u32 %s0, 4
      %s15 = int_to_ptr.hbm [resolvable:$true] %s14
      %s16 = sshll.u32 [#allocation2], 4
      %s17 = int_to_ptr.vmem [resolvable:$true] %s16
      %22 = dma.hbm_to_vmem [thread:$0]  %s15, 8192, %s17, [#allocation3], 256, 256, 16
    $region5: #{tpu_custom_call.1} parent=1 // pred_fallthru
      _
    // Predicated region
    $region6: #{tpu_custom_call.1} parent=1 // pred_check
      _
    $region7: #{tpu_custom_call.1} parent=1 // pred_check_branch
      %24 = sbr.rel (0) target = $region9
    $region8: #{tpu_custom_call.1} parent=1 // pred_region
      _
    $region9: #{tpu_custom_call.1} parent=1 // pred_fallthru
      _
    // Predicated region
    $region10: #{tpu_custom_call.1} parent=1 // pred_check
      _
    $region11: #{tpu_custom_call.1} parent=1 // pred_check_branch
      %26 = sbr.rel (0) target = $region13
    $region12: #{tpu_custom_call.1} parent=1 // pred_region
      _
    $region13: #{tpu_custom_call.1} parent=1 // pred_fallthru
      _
    // Predicated region
    $region14: #{tpu_custom_call.1} parent=1 // pred_check
      _
    $region15: #{tpu_custom_call.1} parent=1 // pred_check_branch
      %28 = sbr.rel (0) target = $region17
    $region16: #{tpu_custom_call.1} parent=1 // pred_region
      %30 = dma.done [#allocation3], 8192
    $region17: #{tpu_custom_call.1} parent=1 // pred_fallthru
      _
    %v31 = vld [vmem:[#allocation2] sm:$0xff]
    %v32 = vld [vmem:[#allocation2 + $0x8] sm:$0xff]
    %v33 = vld [vmem:[#allocation2 + $0x10] sm:$0xff]
    %v34 = vld [vmem:[#allocation2 + $0x18] sm:$0xff]
    %v35 = vld [vmem:[#allocation2 + $0x20] sm:$0xff]
    %v36 = vld [vmem:[#allocation2 + $0x28] sm:$0xff]
    %v37 = vld [vmem:[#allocation2 + $0x30] sm:$0xff]
    %v38 = vld [vmem:[#allocation2 + $0x38] sm:$0xff]
    %v39 = vld [vmem:[#allocation2 + $0x40] sm:$0xff]
    %v40 = vld [vmem:[#allocation2 + $0x48] sm:$0xff]
    %v41 = vld [vmem:[#allocation2 + $0x50] sm:$0xff]
    %v42 = vld [vmem:[#allocation2 + $0x58] sm:$0xff]
    %v43 = vld [vmem:[#allocation2 + $0x60] sm:$0xff]
    %v44 = vld [vmem:[#allocation2 + $0x68] sm:$0xff]
    %v45 = vld [vmem:[#allocation2 + $0x70] sm:$0xff]
    %v46 = vld [vmem:[#allocation2 + $0x78] sm:$0xff]
    %v47 = vld [vmem:[#allocation2 + $0x80] sm:$0xff]
    %v48 = vld [vmem:[#allocation2 + $0x88] sm:$0xff]
    %v49 = vld [vmem:[#allocation2 + $0x90] sm:$0xff]
    %v50 = vld [vmem:[#allocation2 + $0x98] sm:$0xff]
    %v51 = vld [vmem:[#allocation2 + $0xa0] sm:$0xff]
    %v52 = vld [vmem:[#allocation2 + $0xa8] sm:$0xff]
    %v53 = vld [vmem:[#allocation2 + $0xb0] sm:$0xff]
    %v54 = vld [vmem:[#allocation2 + $0xb8] sm:$0xff]
    %v55 = vld [vmem:[#allocation2 + $0xc0] sm:$0xff]
    %v56 = vld [vmem:[#allocation2 + $0xc8] sm:$0xff]
    %v57 = vld [vmem:[#allocation2 + $0xd0] sm:$0xff]
    %v58 = vld [vmem:[#allocation2 + $0xd8] sm:$0xff]
    %v59 = vld [vmem:[#allocation2 + $0xe0] sm:$0xff]
    %v60 = vld [vmem:[#allocation2 + $0xe8] sm:$0xff]
    %v61 = vld [vmem:[#allocation2 + $0xf0] sm:$0xff]
    %v62 = vld [vmem:[#allocation2 + $0xf8] sm:$0xff]
    %v63 = vld [vmem:[#allocation2 + $0x100] sm:$0xff]
    %v64 = vld [vmem:[#allocation2 + $0x108] sm:$0xff]
    %v65 = vld [vmem:[#allocation2 + $0x110] sm:$0xff]
    %v66 = vld [vmem:[#allocation2 + $0x118] sm:$0xff]
    %v67 = vld [vmem:[#allocation2 + $0x120] sm:$0xff]
    %v68 = vld [vmem:[#allocation2 + $0x128] sm:$0xff]
    %v69 = vld [vmem:[#allocation2 + $0x130] sm:$0xff]
    %v70 = vld [vmem:[#allocation2 + $0x138] sm:$0xff]
    %v71 = vld [vmem:[#allocation2 + $0x140] sm:$0xff]
    %v72 = vld [vmem:[#allocation2 + $0x148] sm:$0xff]
    %v73 = vld [vmem:[#allocation2 + $0x150] sm:$0xff]
    %v74 = vld [vmem:[#allocation2 + $0x158] sm:$0xff]
    %v75 = vld [vmem:[#allocation2 + $0x160] sm:$0xff]
    %v76 = vld [vmem:[#allocation2 + $0x168] sm:$0xff]
    %v77 = vld [vmem:[#allocation2 + $0x170] sm:$0xff]
    %v78 = vld [vmem:[#allocation2 + $0x178] sm:$0xff]
    %v79 = vld [vmem:[#allocation2 + $0x180] sm:$0xff]
    %v80 = vld [vmem:[#allocation2 + $0x188] sm:$0xff]
    %v81 = vld [vmem:[#allocation2 + $0x190] sm:$0xff]
    %v82 = vld [vmem:[#allocation2 + $0x198] sm:$0xff]
    %v83 = vld [vmem:[#allocation2 + $0x1a0] sm:$0xff]
    %v84 = vld [vmem:[#allocation2 + $0x1a8] sm:$0xff]
    %v85 = vld [vmem:[#allocation2 + $0x1b0] sm:$0xff]
    %v86 = vld [vmem:[#allocation2 + $0x1b8] sm:$0xff]
    %v87 = vld [vmem:[#allocation2 + $0x1c0] sm:$0xff]
    %v88 = vld [vmem:[#allocation2 + $0x1c8] sm:$0xff]
    %v89 = vld [vmem:[#allocation2 + $0x1d0] sm:$0xff]
    %v90 = vld [vmem:[#allocation2 + $0x1d8] sm:$0xff]
    %v91 = vld [vmem:[#allocation2 + $0x1e0] sm:$0xff]
    %v92 = vld [vmem:[#allocation2 + $0x1e8] sm:$0xff]
    %v93 = vld [vmem:[#allocation2 + $0x1f0] sm:$0xff]
    %v94 = vld [vmem:[#allocation2 + $0x1f8] sm:$0xff]
    %v95 = vadd.f32 %v31, %v32
    %96 = vadd.xlane.f32.xlu0 %v95
    %v97 = vpop.xlane.xlu0 %96
    %v98 = vadd.f32 %v33, %v34
    %99 = vadd.xlane.f32.xlu0 %v98
    %v100 = vpop.xlane.xlu0 %99
    %v101 = vadd.f32 %v35, %v36
    %102 = vadd.xlane.f32.xlu0 %v101
    %v103 = vpop.xlane.xlu0 %102
    %v104 = vadd.f32 %v37, %v38
    %105 = vadd.xlane.f32.xlu0 %v104
    %v106 = vpop.xlane.xlu0 %105
    %v107 = vadd.f32 %v39, %v40
    %108 = vadd.xlane.f32.xlu0 %v107
    %v109 = vpop.xlane.xlu0 %108
    %v110 = vadd.f32 %v41, %v42
    %111 = vadd.xlane.f32.xlu0 %v110
    %v112 = vpop.xlane.xlu0 %111
    %v113 = vadd.f32 %v43, %v44
    %114 = vadd.xlane.f32.xlu0 %v113
    %v115 = vpop.xlane.xlu0 %114
    %v116 = vadd.f32 %v45, %v46
    %117 = vadd.xlane.f32.xlu0 %v116
    %v118 = vpop.xlane.xlu0 %117
    %v119 = vadd.f32 %v47, %v48
    %120 = vadd.xlane.f32.xlu0 %v119
    %v121 = vpop.xlane.xlu0 %120
    %v122 = vadd.f32 %v49, %v50
    %123 = vadd.xlane.f32.xlu0 %v122
    %v124 = vpop.xlane.xlu0 %123
    %v125 = vadd.f32 %v51, %v52
    %126 = vadd.xlane.f32.xlu0 %v125
    %v127 = vpop.xlane.xlu0 %126
    %v128 = vadd.f32 %v53, %v54
    %129 = vadd.xlane.f32.xlu0 %v128
    %v130 = vpop.xlane.xlu0 %129
    %v131 = vadd.f32 %v55, %v56
    %132 = vadd.xlane.f32.xlu0 %v131
    %v133 = vpop.xlane.xlu0 %132
    %v134 = vadd.f32 %v57, %v58
    %135 = vadd.xlane.f32.xlu0 %v134
    %v136 = vpop.xlane.xlu0 %135
    %v137 = vadd.f32 %v59, %v60
    %138 = vadd.xlane.f32.xlu0 %v137
    %v139 = vpop.xlane.xlu0 %138
    %v140 = vadd.f32 %v61, %v62
    %141 = vadd.xlane.f32.xlu0 %v140
    %v142 = vpop.xlane.xlu0 %141
    %v143 = vadd.f32 %v63, %v64
    %144 = vadd.xlane.f32.xlu0 %v143
    %v145 = vpop.xlane.xlu0 %144
    %v146 = vadd.f32 %v65, %v66
    %147 = vadd.xlane.f32.xlu0 %v146
    %v148 = vpop.xlane.xlu0 %147
    %v149 = vadd.f32 %v67, %v68
    %150 = vadd.xlane.f32.xlu0 %v149
    %v151 = vpop.xlane.xlu0 %150
    %v152 = vadd.f32 %v69, %v70
    %153 = vadd.xlane.f32.xlu0 %v152
    %v154 = vpop.xlane.xlu0 %153
    %v155 = vadd.f32 %v71, %v72
    %156 = vadd.xlane.f32.xlu0 %v155
    %v157 = vpop.xlane.xlu0 %156
    %v158 = vadd.f32 %v73, %v74
    %159 = vadd.xlane.f32.xlu0 %v158
    %v160 = vpop.xlane.xlu0 %159
    %v161 = vadd.f32 %v75, %v76
    %162 = vadd.xlane.f32.xlu0 %v161
    %v163 = vpop.xlane.xlu0 %162
    %v164 = vadd.f32 %v77, %v78
    %165 = vadd.xlane.f32.xlu0 %v164
    %v166 = vpop.xlane.xlu0 %165
    %v167 = vadd.f32 %v79, %v80
    %168 = vadd.xlane.f32.xlu0 %v167
    %v169 = vpop.xlane.xlu0 %168
    %v170 = vadd.f32 %v81, %v82
    %171 = vadd.xlane.f32.xlu0 %v170
    %v172 = vpop.xlane.xlu0 %171
    %v173 = vadd.f32 %v83, %v84
    %174 = vadd.xlane.f32.xlu0 %v173
    %v175 = vpop.xlane.xlu0 %174
    %v176 = vadd.f32 %v85, %v86
    %177 = vadd.xlane.f32.xlu0 %v176
    %v178 = vpop.xlane.xlu0 %177
    %v179 = vadd.f32 %v87, %v88
    %180 = vadd.xlane.f32.xlu0 %v179
    %v181 = vpop.xlane.xlu0 %180
    %v182 = vadd.f32 %v89, %v90
    %183 = vadd.xlane.f32.xlu0 %v182
    %v184 = vpop.xlane.xlu0 %183
    %v185 = vadd.f32 %v91, %v92
    %186 = vadd.xlane.f32.xlu0 %v185
    %v187 = vpop.xlane.xlu0 %186
    %v188 = vadd.f32 %v93, %v94
    %189 = vadd.xlane.f32.xlu0 %v188
    %v190 = vpop.xlane.xlu0 %189
    %v191 = vmul.f32 %v97, 0.00390625
    %v192 = vmul.f32 %v100, 0.00390625
    %v193 = vmul.f32 %v103, 0.00390625
    %v194 = vmul.f32 %v106, 0.00390625
    %v195 = vmul.f32 %v109, 0.00390625
    %v196 = vmul.f32 %v112, 0.00390625
    %v197 = vmul.f32 %v115, 0.00390625
    %v198 = vmul.f32 %v118, 0.00390625
    %v199 = vmul.f32 %v121, 0.00390625
    %v200 = vmul.f32 %v124, 0.00390625
    %v201 = vmul.f32 %v127, 0.00390625
    %v202 = vmul.f32 %v130, 0.00390625
    %v203 = vmul.f32 %v133, 0.00390625
    %v204 = vmul.f32 %v136, 0.00390625
    %v205 = vmul.f32 %v139, 0.00390625
    %v206 = vmul.f32 %v142, 0.00390625
    %v207 = vmul.f32 %v145, 0.00390625
    %v208 = vmul.f32 %v148, 0.00390625
    %v209 = vmul.f32 %v151, 0.00390625
    %v210 = vmul.f32 %v154, 0.00390625
    %v211 = vmul.f32 %v157, 0.00390625
    %v212 = vmul.f32 %v160, 0.00390625
    %v213 = vmul.f32 %v163, 0.00390625
    %v214 = vmul.f32 %v166, 0.00390625
    %v215 = vmul.f32 %v169, 0.00390625
    %v216 = vmul.f32 %v172, 0.00390625
    %v217 = vmul.f32 %v175, 0.00390625
    %v218 = vmul.f32 %v178, 0.00390625
    %v219 = vmul.f32 %v181, 0.00390625
    %v220 = vmul.f32 %v184, 0.00390625
    %v221 = vmul.f32 %v187, 0.00390625
    %v222 = vmul.f32 %v190, 0.00390625
    %v223 = vld [vmem:[%s1] sm:$0xff]
    %v224 = vld [vmem:[%s1 + $0x8] sm:$0xff]
    %v225 = vld [vmem:[%s1 + $0x10] sm:$0xff]
    %v226 = vld [vmem:[%s1 + $0x18] sm:$0xff]
    %v259 = vlaneseq
    %v260 = vand.u32 %v259, 127
    %v261 = vperm.slane %v191, %v260
    %v262 = vadd.s32 %v260, 4294967288
    %v263 = vperm.slane %v192, %v262
    %vm264 = vcmask 130112
    %v265 = vsel %vm264, %v263, %v261
    %v266 = vadd.s32 %v260, 4294967280
    %v267 = vperm.slane %v193, %v266
    %vm268 = vcmask 195712
    %v269 = vsel %vm268, %v267, %v265
    %v270 = vadd.s32 %v260, 4294967272
    %v271 = vperm.slane %v194, %v270
    %vm272 = vcmask 261312
    %v273 = vsel %vm272, %v271, %v269
    %v274 = vperm.slane %v195, %v260
    %v275 = vperm.slane %v196, %v262
    %v276 = vsel %vm264, %v275, %v274
    %v277 = vperm.slane %v197, %v266
    %v278 = vsel %vm268, %v277, %v276
    %v279 = vperm.slane %v198, %v270
    %v280 = vsel %vm272, %v279, %v278
    %v281 = vperm.slane %v199, %v260
    %v282 = vperm.slane %v200, %v262
    %v283 = vsel %vm264, %v282, %v281
    %v284 = vperm.slane %v201, %v266
    %v285 = vsel %vm268, %v284, %v283
    %v286 = vperm.slane %v202, %v270
    %v287 = vsel %vm272, %v286, %v285
    %v288 = vperm.slane %v203, %v260
    %v289 = vperm.slane %v204, %v262
    %v290 = vsel %vm264, %v289, %v288
    %v291 = vperm.slane %v205, %v266
    %v292 = vsel %vm268, %v291, %v290
    %v293 = vperm.slane %v206, %v270
    %v294 = vsel %vm272, %v293, %v292
    %v295 = vperm.slane %v207, %v260
    %v296 = vperm.slane %v208, %v262
    %v297 = vsel %vm264, %v296, %v295
    %v298 = vperm.slane %v209, %v266
    %v299 = vsel %vm268, %v298, %v297
    %v300 = vperm.slane %v210, %v270
    %v301 = vsel %vm272, %v300, %v299
    %v302 = vperm.slane %v211, %v260
    %v303 = vperm.slane %v212, %v262
    %v304 = vsel %vm264, %v303, %v302
    %v305 = vperm.slane %v213, %v266
    %v306 = vsel %vm268, %v305, %v304
    %v307 = vperm.slane %v214, %v270
    %v308 = vsel %vm272, %v307, %v306
    %v309 = vperm.slane %v215, %v260
    %v310 = vperm.slane %v216, %v262
    %v311 = vsel %vm264, %v310, %v309
    %v312 = vperm.slane %v217, %v266
    %v313 = vsel %vm268, %v312, %v311
    %v314 = vperm.slane %v218, %v270
    %v315 = vsel %vm272, %v314, %v313
    %v316 = vperm.slane %v219, %v260
    %v317 = vperm.slane %v220, %v262
    %v318 = vsel %vm264, %v317, %v316
    %v319 = vperm.slane %v221, %v266
    %v320 = vsel %vm268, %v319, %v318
    %v321 = vperm.slane %v222, %v270
    %v322 = vsel %vm272, %v321, %v320
    %vm323 = vcmask 1041409
    %v324 = vsel %vm323, %v280, %v273
    %vm325 = vcmask 1042434
    %v326 = vsel %vm325, %v287, %v324
    %vm327 = vcmask 1043459
    %v328 = vsel %vm327, %v294, %v326
    %vm329 = vcmask 1044484
    %v330 = vsel %vm329, %v301, %v328
    %vm331 = vcmask 1045509
    %v332 = vsel %vm331, %v308, %v330
    %vm333 = vcmask 1046534
    %v334 = vsel %vm333, %v315, %v332
    %vm335 = vcmask 1047559
    %v336 = vsel %vm335, %v322, %v334
    %vm337 = vcmask 261120
    %v338 = vsel %vm337, %v336, 0
    %340 = vmatpush.msra.mxu0 0.0
    %341 = vmatpush.msra.mxu0 0.0
    %342 = vmatpush.msra.mxu0 0.0
    %343 = vmatpush.msra.mxu0 0.0
    %344 = vmatpush.msra.mxu0 0.0
    %345 = vmatpush.msra.mxu0 0.0
    %346 = vmatpush.msra.mxu0 0.0
    %347 = vmatpush.msra.mxu0 0.0
    %348 = vmatpush.msra.mxu0 0.0
    %349 = vmatpush.msra.mxu0 0.0
    %350 = vmatpush.msra.mxu0 0.0
    %351 = vmatpush.msra.mxu0 0.0
    %352 = vmatpush.msra.mxu0 %v226
    %353 = vmatpush.msra.mxu0 %v225
    %354 = vmatpush.msra.mxu0 %v224
    %355 = vmatpush.msra.mxu0 %v223
    %356 = vmatmul.f32.gmra.mxu0 %v338
    %v357 = vpop.f32.mrf.mxu0
    %v358 = vadd.f32 0.0, %v357
    %359 = vdwg.mxu0
    %v360 = vmax.f32 %v358, 0.0
    %v361 = vld [vmem:[%s2] sm:$0xff]
    %vm362 = vcmask 64512
    %v364 = vsel %vm362, %v360, 0
    %366 = vmatpush.msra.mxu0 0.0
    %367 = vmatpush.msra.mxu0 0.0
    %368 = vmatpush.msra.mxu0 0.0
    %369 = vmatpush.msra.mxu0 0.0
    %370 = vmatpush.msra.mxu0 0.0
    %371 = vmatpush.msra.mxu0 0.0
    %372 = vmatpush.msra.mxu0 0.0
    %373 = vmatpush.msra.mxu0 0.0
    %374 = vmatpush.msra.mxu0 0.0
    %375 = vmatpush.msra.mxu0 0.0
    %376 = vmatpush.msra.mxu0 0.0
    %377 = vmatpush.msra.mxu0 0.0
    %378 = vmatpush.msra.mxu0 0.0
    %379 = vmatpush.msra.mxu0 0.0
    %380 = vmatpush.msra.mxu0 0.0
    %381 = vmatpush.msra.mxu0 %v361
    %382 = vmatmul.f32.gmra.mxu0 %v364
    %v383 = vpop.f32.mrf.mxu0
    %v384 = vadd.f32 0.0, %v383
    %385 = vdwg.mxu0
    %v386 = vxor.u32 %v384, 2147483648
    %v387 = vmul.f32 %v386, 1.442695
    %v388 = vpow.pop %v387
    %v389 = vadd.f32 %v388, 1.0
    %v390 = vrcp.pop %v389
    %v391 = vmul.f32 %v389, %v390
    %v392 = vsub.f32 1.0, %v391
    %v393 = vmul.f32 %v390, %v392
    %v394 = vadd.f32 %v390, %v393
    %vm395 = vweird.f32 %v389
    %vm396 = vweird.f32 %v390
    %vm397 = vmor %vm395, %vm396
    %v398 = vsel %vm397, %v390, %v394
    %v399 = vand.u32 2147483647, %v389
    %vm400 = vcmp.eq.f32.partialorder %v399, 8.507059e+37
    %v401 = vand.u32 %v389, 2147483648
    %v402 = vor.u32 1.1754944e-38, %v401
    %v403 = vsel %vm400, %v402, %v398
    %v404 = vmul.f32 1.0, %v403
    %v405 = vperm.slane %v404, 0
    %v406 = vlaneseq
    %v407 = vshrl.u32 %v406, 7
    %409 = vset.pattern.permute.xlu0 %v407
    %410 = vperm.xlu0 %409, %v405
    %v411 = vpop.permute.xlu0 %410
    %v412 = vlaneseq
    %v413 = vshrl.u32 %v412, 7
    %v414 = vadd.s32 %v413, 8
    %415 = vset.pattern.permute.xlu0 %v414
    %416 = vperm.xlu0 %415, %v405
    %v417 = vpop.permute.xlu0 %416
    %v418 = vlaneseq
    %v419 = vshrl.u32 %v418, 7
    %v420 = vadd.s32 %v419, 16
    %421 = vset.pattern.permute.xlu0 %v420
    %422 = vperm.xlu0 %421, %v405
    %v423 = vpop.permute.xlu0 %422
    %v424 = vlaneseq
    %v425 = vshrl.u32 %v424, 7
    %v426 = vadd.s32 %v425, 24
    %427 = vset.pattern.permute.xlu0 %v426
    %428 = vperm.xlu0 %427, %v405
    %v429 = vpop.permute.xlu0 %428
    %v430 = vperm.slane %v404, 1
    %v431 = vlaneseq
    %v432 = vshrl.u32 %v431, 7
    %434 = vset.pattern.permute.xlu0 %v432
    %435 = vperm.xlu0 %434, %v430
    %v436 = vpop.permute.xlu0 %435
    %v437 = vlaneseq
    %v438 = vshrl.u32 %v437, 7
    %v439 = vadd.s32 %v438, 8
    %440 = vset.pattern.permute.xlu0 %v439
    %441 = vperm.xlu0 %440, %v430
    %v442 = vpop.permute.xlu0 %441
    %v443 = vlaneseq
    %v444 = vshrl.u32 %v443, 7
    %v445 = vadd.s32 %v444, 16
    %446 = vset.pattern.permute.xlu0 %v445
    %447 = vperm.xlu0 %446, %v430
    %v448 = vpop.permute.xlu0 %447
    %v449 = vlaneseq
    %v450 = vshrl.u32 %v449, 7
    %v451 = vadd.s32 %v450, 24
    %452 = vset.pattern.permute.xlu0 %v451
    %453 = vperm.xlu0 %452, %v430
    %v454 = vpop.permute.xlu0 %453
    %v455 = vperm.slane %v404, 2
    %v456 = vlaneseq
    %v457 = vshrl.u32 %v456, 7
    %459 = vset.pattern.permute.xlu0 %v457
    %460 = vperm.xlu0 %459, %v455
    %v461 = vpop.permute.xlu0 %460
    %v462 = vlaneseq
    %v463 = vshrl.u32 %v462, 7
    %v464 = vadd.s32 %v463, 8
    %465 = vset.pattern.permute.xlu0 %v464
    %466 = vperm.xlu0 %465, %v455
    %v467 = vpop.permute.xlu0 %466
    %v468 = vlaneseq
    %v469 = vshrl.u32 %v468, 7
    %v470 = vadd.s32 %v469, 16
    %471 = vset.pattern.permute.xlu0 %v470
    %472 = vperm.xlu0 %471, %v455
    %v473 = vpop.permute.xlu0 %472
    %v474 = vlaneseq
    %v475 = vshrl.u32 %v474, 7
    %v476 = vadd.s32 %v475, 24
    %477 = vset.pattern.permute.xlu0 %v476
    %478 = vperm.xlu0 %477, %v455
    %v479 = vpop.permute.xlu0 %478
    %v480 = vperm.slane %v404, 3
    %v481 = vlaneseq
    %v482 = vshrl.u32 %v481, 7
    %484 = vset.pattern.permute.xlu0 %v482
    %485 = vperm.xlu0 %484, %v480
    %v486 = vpop.permute.xlu0 %485
    %v487 = vlaneseq
    %v488 = vshrl.u32 %v487, 7
    %v489 = vadd.s32 %v488, 8
    %490 = vset.pattern.permute.xlu0 %v489
    %491 = vperm.xlu0 %490, %v480
    %v492 = vpop.permute.xlu0 %491
    %v493 = vlaneseq
    %v494 = vshrl.u32 %v493, 7
    %v495 = vadd.s32 %v494, 16
    %496 = vset.pattern.permute.xlu0 %v495
    %497 = vperm.xlu0 %496, %v480
    %v498 = vpop.permute.xlu0 %497
    %v499 = vlaneseq
    %v500 = vshrl.u32 %v499, 7
    %v501 = vadd.s32 %v500, 24
    %502 = vset.pattern.permute.xlu0 %v501
    %503 = vperm.xlu0 %502, %v480
    %v504 = vpop.permute.xlu0 %503
    %v505 = vperm.slane %v404, 4
    %v506 = vlaneseq
    %v507 = vshrl.u32 %v506, 7
    %509 = vset.pattern.permute.xlu0 %v507
    %510 = vperm.xlu0 %509, %v505
    %v511 = vpop.permute.xlu0 %510
    %v512 = vlaneseq
    %v513 = vshrl.u32 %v512, 7
    %v514 = vadd.s32 %v513, 8
    %515 = vset.pattern.permute.xlu0 %v514
    %516 = vperm.xlu0 %515, %v505
    %v517 = vpop.permute.xlu0 %516
    %v518 = vlaneseq
    %v519 = vshrl.u32 %v518, 7
    %v520 = vadd.s32 %v519, 16
    %521 = vset.pattern.permute.xlu0 %v520
    %522 = vperm.xlu0 %521, %v505
    %v523 = vpop.permute.xlu0 %522
    %v524 = vlaneseq
    %v525 = vshrl.u32 %v524, 7
    %v526 = vadd.s32 %v525, 24
    %527 = vset.pattern.permute.xlu0 %v526
    %528 = vperm.xlu0 %527, %v505
    %v529 = vpop.permute.xlu0 %528
    %v530 = vperm.slane %v404, 5
    %v531 = vlaneseq
    %v532 = vshrl.u32 %v531, 7
    %534 = vset.pattern.permute.xlu0 %v532
    %535 = vperm.xlu0 %534, %v530
    %v536 = vpop.permute.xlu0 %535
    %v537 = vlaneseq
    %v538 = vshrl.u32 %v537, 7
    %v539 = vadd.s32 %v538, 8
    %540 = vset.pattern.permute.xlu0 %v539
    %541 = vperm.xlu0 %540, %v530
    %v542 = vpop.permute.xlu0 %541
    %v543 = vlaneseq
    %v544 = vshrl.u32 %v543, 7
    %v545 = vadd.s32 %v544, 16
    %546 = vset.pattern.permute.xlu0 %v545
    %547 = vperm.xlu0 %546, %v530
    %v548 = vpop.permute.xlu0 %547
    %v549 = vlaneseq
    %v550 = vshrl.u32 %v549, 7
    %v551 = vadd.s32 %v550, 24
    %552 = vset.pattern.permute.xlu0 %v551
    %553 = vperm.xlu0 %552, %v530
    %v554 = vpop.permute.xlu0 %553
    %v555 = vperm.slane %v404, 6
    %v556 = vlaneseq
    %v557 = vshrl.u32 %v556, 7
    %559 = vset.pattern.permute.xlu0 %v557
    %560 = vperm.xlu0 %559, %v555
    %v561 = vpop.permute.xlu0 %560
    %v562 = vlaneseq
    %v563 = vshrl.u32 %v562, 7
    %v564 = vadd.s32 %v563, 8
    %565 = vset.pattern.permute.xlu0 %v564
    %566 = vperm.xlu0 %565, %v555
    %v567 = vpop.permute.xlu0 %566
    %v568 = vlaneseq
    %v569 = vshrl.u32 %v568, 7
    %v570 = vadd.s32 %v569, 16
    %571 = vset.pattern.permute.xlu0 %v570
    %572 = vperm.xlu0 %571, %v555
    %v573 = vpop.permute.xlu0 %572
    %v574 = vlaneseq
    %v575 = vshrl.u32 %v574, 7
    %v576 = vadd.s32 %v575, 24
    %577 = vset.pattern.permute.xlu0 %v576
    %578 = vperm.xlu0 %577, %v555
    %v579 = vpop.permute.xlu0 %578
    %v580 = vperm.slane %v404, 7
    %v581 = vlaneseq
    %v582 = vshrl.u32 %v581, 7
    %584 = vset.pattern.permute.xlu0 %v582
    %585 = vperm.xlu0 %584, %v580
    %v586 = vpop.permute.xlu0 %585
    %v587 = vlaneseq
    %v588 = vshrl.u32 %v587, 7
    %v589 = vadd.s32 %v588, 8
    %590 = vset.pattern.permute.xlu0 %v589
    %591 = vperm.xlu0 %590, %v580
    %v592 = vpop.permute.xlu0 %591
    %v593 = vlaneseq
    %v594 = vshrl.u32 %v593, 7
    %v595 = vadd.s32 %v594, 16
    %596 = vset.pattern.permute.xlu0 %v595
    %597 = vperm.xlu0 %596, %v580
    %v598 = vpop.permute.xlu0 %597
    %v599 = vlaneseq
    %v600 = vshrl.u32 %v599, 7
    %v601 = vadd.s32 %v600, 24
    %602 = vset.pattern.permute.xlu0 %v601
    %603 = vperm.xlu0 %602, %v580
    %v604 = vpop.permute.xlu0 %603
    %v605 = vmul.f32 %v31, %v411
    %v606 = vmul.f32 %v32, %v411
    %v607 = vmul.f32 %v33, %v417
    %v608 = vmul.f32 %v34, %v417
    %v609 = vmul.f32 %v35, %v423
    %v610 = vmul.f32 %v36, %v423
    %v611 = vmul.f32 %v37, %v429
    %v612 = vmul.f32 %v38, %v429
    %v613 = vmul.f32 %v39, %v436
    %v614 = vmul.f32 %v40, %v436
    %v615 = vmul.f32 %v41, %v442
    %v616 = vmul.f32 %v42, %v442
    %v617 = vmul.f32 %v43, %v448
    %v618 = vmul.f32 %v44, %v448
    %v619 = vmul.f32 %v45, %v454
    %v620 = vmul.f32 %v46, %v454
    %v621 = vmul.f32 %v47, %v461
    %v622 = vmul.f32 %v48, %v461
    %v623 = vmul.f32 %v49, %v467
    %v624 = vmul.f32 %v50, %v467
    %v625 = vmul.f32 %v51, %v473
    %v626 = vmul.f32 %v52, %v473
    %v627 = vmul.f32 %v53, %v479
    %v628 = vmul.f32 %v54, %v479
    %v629 = vmul.f32 %v55, %v486
    %v630 = vmul.f32 %v56, %v486
    %v631 = vmul.f32 %v57, %v492
    %v632 = vmul.f32 %v58, %v492
    %v633 = vmul.f32 %v59, %v498
    %v634 = vmul.f32 %v60, %v498
    %v635 = vmul.f32 %v61, %v504
    %v636 = vmul.f32 %v62, %v504
    %v637 = vmul.f32 %v63, %v511
    %v638 = vmul.f32 %v64, %v511
    %v639 = vmul.f32 %v65, %v517
    %v640 = vmul.f32 %v66, %v517
    %v641 = vmul.f32 %v67, %v523
    %v642 = vmul.f32 %v68, %v523
    %v643 = vmul.f32 %v69, %v529
    %v644 = vmul.f32 %v70, %v529
    %v645 = vmul.f32 %v71, %v536
    %v646 = vmul.f32 %v72, %v536
    %v647 = vmul.f32 %v73, %v542
    %v648 = vmul.f32 %v74, %v542
    %v649 = vmul.f32 %v75, %v548
    %v650 = vmul.f32 %v76, %v548
    %v651 = vmul.f32 %v77, %v554
    %v652 = vmul.f32 %v78, %v554
    %v653 = vmul.f32 %v79, %v561
    %v654 = vmul.f32 %v80, %v561
    %v655 = vmul.f32 %v81, %v567
    %v656 = vmul.f32 %v82, %v567
    %v657 = vmul.f32 %v83, %v573
    %v658 = vmul.f32 %v84, %v573
    %v659 = vmul.f32 %v85, %v579
    %v660 = vmul.f32 %v86, %v579
    %v661 = vmul.f32 %v87, %v586
    %v662 = vmul.f32 %v88, %v586
    %v663 = vmul.f32 %v89, %v592
    %v664 = vmul.f32 %v90, %v592
    %v665 = vmul.f32 %v91, %v598
    %v666 = vmul.f32 %v92, %v598
    %v667 = vmul.f32 %v93, %v604
    %v668 = vmul.f32 %v94, %v604
    %669 = vst [vmem:[#allocation5] sm:$0xff] %v605
    %670 = vst [vmem:[#allocation5 + $0x8] sm:$0xff] %v606
    %671 = vst [vmem:[#allocation5 + $0x10] sm:$0xff] %v607
    %672 = vst [vmem:[#allocation5 + $0x18] sm:$0xff] %v608
    %673 = vst [vmem:[#allocation5 + $0x20] sm:$0xff] %v609
    %674 = vst [vmem:[#allocation5 + $0x28] sm:$0xff] %v610
    %675 = vst [vmem:[#allocation5 + $0x30] sm:$0xff] %v611
    %676 = vst [vmem:[#allocation5 + $0x38] sm:$0xff] %v612
    %677 = vst [vmem:[#allocation5 + $0x40] sm:$0xff] %v613
    %678 = vst [vmem:[#allocation5 + $0x48] sm:$0xff] %v614
    %679 = vst [vmem:[#allocation5 + $0x50] sm:$0xff] %v615
    %680 = vst [vmem:[#allocation5 + $0x58] sm:$0xff] %v616
    %681 = vst [vmem:[#allocation5 + $0x60] sm:$0xff] %v617
    %682 = vst [vmem:[#allocation5 + $0x68] sm:$0xff] %v618
    %683 = vst [vmem:[#allocation5 + $0x70] sm:$0xff] %v619
    %684 = vst [vmem:[#allocation5 + $0x78] sm:$0xff] %v620
    %685 = vst [vmem:[#allocation5 + $0x80] sm:$0xff] %v621
    %686 = vst [vmem:[#allocation5 + $0x88] sm:$0xff] %v622
    %687 = vst [vmem:[#allocation5 + $0x90] sm:$0xff] %v623
    %688 = vst [vmem:[#allocation5 + $0x98] sm:$0xff] %v624
    %689 = vst [vmem:[#allocation5 + $0xa0] sm:$0xff] %v625
    %690 = vst [vmem:[#allocation5 + $0xa8] sm:$0xff] %v626
    %691 = vst [vmem:[#allocation5 + $0xb0] sm:$0xff] %v627
    %692 = vst [vmem:[#allocation5 + $0xb8] sm:$0xff] %v628
    %693 = vst [vmem:[#allocation5 + $0xc0] sm:$0xff] %v629
    %694 = vst [vmem:[#allocation5 + $0xc8] sm:$0xff] %v630
    %695 = vst [vmem:[#allocation5 + $0xd0] sm:$0xff] %v631
    %696 = vst [vmem:[#allocation5 + $0xd8] sm:$0xff] %v632
    %697 = vst [vmem:[#allocation5 + $0xe0] sm:$0xff] %v633
    %698 = vst [vmem:[#allocation5 + $0xe8] sm:$0xff] %v634
    %699 = vst [vmem:[#allocation5 + $0xf0] sm:$0xff] %v635
    %700 = vst [vmem:[#allocation5 + $0xf8] sm:$0xff] %v636
    %701 = vst [vmem:[#allocation5 + $0x100] sm:$0xff] %v637
    %702 = vst [vmem:[#allocation5 + $0x108] sm:$0xff] %v638
    %703 = vst [vmem:[#allocation5 + $0x110] sm:$0xff] %v639
    %704 = vst [vmem:[#allocation5 + $0x118] sm:$0xff] %v640
    %705 = vst [vmem:[#allocation5 + $0x120] sm:$0xff] %v641
    %706 = vst [vmem:[#allocation5 + $0x128] sm:$0xff] %v642
    %707 = vst [vmem:[#allocation5 + $0x130] sm:$0xff] %v643
    %708 = vst [vmem:[#allocation5 + $0x138] sm:$0xff] %v644
    %709 = vst [vmem:[#allocation5 + $0x140] sm:$0xff] %v645
    %710 = vst [vmem:[#allocation5 + $0x148] sm:$0xff] %v646
    %711 = vst [vmem:[#allocation5 + $0x150] sm:$0xff] %v647
    %712 = vst [vmem:[#allocation5 + $0x158] sm:$0xff] %v648
    %713 = vst [vmem:[#allocation5 + $0x160] sm:$0xff] %v649
    %714 = vst [vmem:[#allocation5 + $0x168] sm:$0xff] %v650
    %715 = vst [vmem:[#allocation5 + $0x170] sm:$0xff] %v651
    %716 = vst [vmem:[#allocation5 + $0x178] sm:$0xff] %v652
    %717 = vst [vmem:[#allocation5 + $0x180] sm:$0xff] %v653
    %718 = vst [vmem:[#allocation5 + $0x188] sm:$0xff] %v654
    %719 = vst [vmem:[#allocation5 + $0x190] sm:$0xff] %v655
    %720 = vst [vmem:[#allocation5 + $0x198] sm:$0xff] %v656
    %721 = vst [vmem:[#allocation5 + $0x1a0] sm:$0xff] %v657
    %722 = vst [vmem:[#allocation5 + $0x1a8] sm:$0xff] %v658
    %723 = vst [vmem:[#allocation5 + $0x1b0] sm:$0xff] %v659
    %724 = vst [vmem:[#allocation5 + $0x1b8] sm:$0xff] %v660
    %725 = vst [vmem:[#allocation5 + $0x1c0] sm:$0xff] %v661
    %726 = vst [vmem:[#allocation5 + $0x1c8] sm:$0xff] %v662
    %727 = vst [vmem:[#allocation5 + $0x1d0] sm:$0xff] %v663
    %728 = vst [vmem:[#allocation5 + $0x1d8] sm:$0xff] %v664
    %729 = vst [vmem:[#allocation5 + $0x1e0] sm:$0xff] %v665
    %730 = vst [vmem:[#allocation5 + $0x1e8] sm:$0xff] %v666
    %731 = vst [vmem:[#allocation5 + $0x1f0] sm:$0xff] %v667
    %732 = vst [vmem:[#allocation5 + $0x1f8] sm:$0xff] %v668
    // Predicated region
    $region18: #{tpu_custom_call.1} parent=1 // pred_check
      _
    $region19: #{tpu_custom_call.1} parent=1 // pred_check_branch
      %734 = sbr.rel (0) target = $region21
    $region20: #{tpu_custom_call.1} parent=1 // pred_region
      %736 = vsyncadd [#allocation4], 0
      %s737 = sshll.u32 [#allocation5], 4
      %s738 = int_to_ptr.vmem [resolvable:$true] %s737
      %s739 = sshll.u32 %s3, 4
      %s740 = int_to_ptr.hbm [resolvable:$true] %s739
      %745 = dma.vmem_to_hbm [thread:$0]  %s738, 8192, %s740, [#allocation4], 256, 256, 16
    $region21: #{tpu_custom_call.1} parent=1 // pred_fallthru
      _
    // Predicated region
    $region22: #{tpu_custom_call.1} parent=1 // pred_check
      _
    $region23: #{tpu_custom_call.1} parent=1 // pred_check_branch
      %747 = sbr.rel (0) target = $region25
    $region24: #{tpu_custom_call.1} parent=1 // pred_region
      %749 = dma.done [#allocation4], 8192
    $region25: #{tpu_custom_call.1} parent=1 // pred_fallthru
      _
    %750 = vsyncpa [#allocation3], 1
    %751 = vsyncpa [#allocation4], 1

</llo_original>
